<compile_context>
chip_gen: v7x
topology: tpu7x:2x2x1
jax: 0.10.0
libtpu: 0.0.40
codegen_flags: <defaults>
</compile_context>

<pallas_src>
import math

import jax
import jax.numpy as jnp
from jax import lax
from jax.experimental import pallas as pl
from jax.experimental.pallas import tpu as pltpu


def make_safl_kernel(dim: int, p_pad: int, tb: int):
    inv_scale = 1.0 / (dim ** 0.5)
    inv_sqrt2 = 1.0 / math.sqrt(2.0)
    ln_eps = 1e-5  # PyTorch LayerNorm default

    def kernel(x_ref, pt_ref, g_ref, beta_ref, w1_ref, b1_ref, w2_ref, b2_ref,
               o_ref):
        # --- part-token attention over the whole (tb, N, D) tile ----------
        x = x_ref[...]                                   # (tb, N, D) f32
        x_bf = x.astype(jnp.bfloat16)                    # cast on VPU, in-kernel
        pt = pt_ref[...]                                 # (P_pad, D) bf16

        # logits: contraction on the last dim of both operands (no transpose
        # of x is ever materialized).
        s = jnp.einsum("pd,bnd->bpn", pt, x_bf,
                       preferred_element_type=jnp.float32)   # (tb, P_pad, N)
        s = s - jnp.max(s, axis=-1, keepdims=True)
        e = jnp.exp(s)
        prob = e / jnp.sum(e, axis=-1, keepdims=True)         # exact softmax

        y = jnp.einsum("bpn,bnd->bpd", prob.astype(jnp.bfloat16), x_bf,
                       preferred_element_type=jnp.float32)    # (tb, P_pad, D)
        y = y * inv_scale

        # --- FeedForwardBlock over the flattened (tb*P_pad, D) slab --------
        # P_pad is a multiple of 8 -> this reshape is sublane-aligned (free).
        y = y.reshape(tb * p_pad, dim)

        # LayerNorm (f32 statistics)
        mu = jnp.mean(y, axis=-1, keepdims=True)
        var = jnp.mean((y - mu) ** 2, axis=-1, keepdims=True)
        yn = (y - mu) * lax.rsqrt(var + ln_eps)
        yn = yn * g_ref[...] + beta_ref[...]                  # (tb*P_pad, D)

        # Linear(D -> 4D) + exact-erf GELU (bf16 MXU operands, f32 acc)
        h = jnp.dot(yn.astype(jnp.bfloat16), w1_ref[...],
                    preferred_element_type=jnp.float32) + b1_ref[...]
        h = 0.5 * h * (1.0 + lax.erf(h * inv_sqrt2))

        # TODO(synk): Dropout(p=0.3) skipped (inference-mode identity).

        # Linear(4D -> D)
        out = jnp.dot(h.astype(jnp.bfloat16), w2_ref[...],
                      preferred_element_type=jnp.float32) + b2_ref[...]

        # Single lane/sublane-dense store of the whole block.
        o_ref[...] = out.astype(o_ref.dtype)

    return kernel


def _choose_tb(B: int, N: int, D: int, p_pad: int) -> int:
    """Pick the batch block so tb*P_pad feeds the MXU without blowing VMEM."""
    rows_target = 512                       # M-rows for the FFN matmuls
    tb_rows = max(1, rows_target // p_pad)
    # Conservative budget for the double-buffered streamed f32 x tile, so the
    # plan also fits v7x (64 MiB physical VMEM) with headroom for weights and
    # the (tb*P_pad, 4D) GELU intermediate.
    vmem_budget = 24 * 1024 * 1024
    per_b = 2 * N * D * 4
    tb_vmem = max(1, vmem_budget // max(per_b, 1))
    return max(1, min(B, tb_rows, tb_vmem))


def safl_forward(x, params):
    """x: (B, N, D) float32 -> (B, P, D) float32."""
    B, N, D = x.shape
    pt = params["part_tokens"]          # (P, D)
    P = pt.shape[0]
    H = params["w1"].shape[1]           # 4*D

    # Pad the part dimension to a multiple of 8 (sublane alignment).  Extra
    # zero part-token rows produce a uniform softmax over real x rows and are
    # sliced off after the call.
    P_pad = ((P + 7) // 8) * 8
    if P_pad != P:
        pt = jnp.pad(pt, ((0, P_pad - P), (0, 0)))

    tb = _choose_tb(B, N, D, P_pad)
    nb = pl.cdiv(B, tb)
    B_pad = nb * tb
    if B_pad != B:
        # zero padding is safe through softmax / LayerNorm (stays finite).
        x = jnp.pad(x, ((0, B_pad - B), (0, 0), (0, 0)))

    # Small constant weights: cast once to bf16 for the MXU (x stays f32 and
    # is cast inside the kernel to avoid an extra HBM pass).
    pt_bf = pt.astype(jnp.bfloat16)
    w1_bf = params["w1"].astype(jnp.bfloat16)
    w2_bf = params["w2"].astype(jnp.bfloat16)

    kernel = make_safl_kernel(D, P_pad, tb)

    grid_spec = pltpu.PrefetchScalarGridSpec(
        num_scalar_prefetch=0,
        grid=(nb,),
        in_specs=[
            pl.BlockSpec((tb, N, D), lambda i: (i, 0, 0)),     # x (f32)
            pl.BlockSpec((P_pad, D), lambda i: (0, 0)),        # part_tokens bf16
            pl.BlockSpec((1, D), lambda i: (0, 0)),            # ln gamma
            pl.BlockSpec((1, D), lambda i: (0, 0)),            # ln beta
            pl.BlockSpec((D, H), lambda i: (0, 0)),            # w1 (bf16)
            pl.BlockSpec((1, H), lambda i: (0, 0)),            # b1
            pl.BlockSpec((H, D), lambda i: (0, 0)),            # w2 (bf16)
            pl.BlockSpec((1, D), lambda i: (0, 0)),            # b2
        ],
        # Lane/sublane-dense flat output slab: one full-tile store per step.
        out_specs=pl.BlockSpec((tb * P_pad, D), lambda i: (i, 0)),
    )

    flops = int(4 * B_pad * P_pad * N * D + 4 * B_pad * P_pad * D * H)
    transcendentals = int(B_pad * P_pad * (N + H + 1))
    bytes_accessed = int(B_pad * N * D * 4                 # x (f32 in)
                         + (P_pad * D + D * H + H * D) * 2  # bf16 weights
                         + (3 * D + H) * 4                  # ln/bias vectors
                         + B_pad * P_pad * D * 4)           # output
    cost = pl.CostEstimate(flops=flops, transcendentals=transcendentals,
                           bytes_accessed=bytes_accessed)

    out_flat = pl.pallas_call(
        kernel,
        out_shape=jax.ShapeDtypeStruct((B_pad * P_pad, D), jnp.float32),
        grid_spec=grid_spec,
        compiler_params=pltpu.CompilerParams(
            dimension_semantics=("parallel",),
            vmem_limit_bytes=48 * 1024 * 1024),
        cost_estimate=cost,
    )(x, pt_bf, params["ln_g"], params["ln_b"], w1_bf, params["b1"],
      w2_bf, params["b2"])

    return out_flat.reshape(B_pad, P_pad, D)[:B, :P, :]


def init_params(key, dim, part_num, expansion=4):
    ks = jax.random.split(key, 6)
    hidden = expansion * dim
    part_tokens = jax.random.normal(ks[0], (part_num, dim), jnp.float32) \
        * math.sqrt(2.0 / dim)
    w1 = jax.random.normal(ks[1], (dim, hidden), jnp.float32) \
        * math.sqrt(2.0 / dim)
    b1 = 0.1 * jax.random.normal(ks[2], (1, hidden), jnp.float32)
    w2 = jax.random.normal(ks[3], (hidden, dim), jnp.float32) \
        * math.sqrt(2.0 / hidden)
    b2 = 0.1 * jax.random.normal(ks[4], (1, dim), jnp.float32)
    ln_g = 1.0 + 0.1 * jax.random.normal(ks[5], (1, dim), jnp.float32)
    ln_b = jnp.zeros((1, dim), jnp.float32)
    return {
        "part_tokens": part_tokens,
        "ln_g": ln_g, "ln_b": ln_b,
        "w1": w1, "b1": b1,
        "w2": w2, "b2": b2,
    }


def _round_bf16(a):
    return a.astype(jnp.bfloat16).astype(jnp.float32)


def safl_reference(x, p, *, mixed=False):
    """Pure-JAX reference. mixed=True mirrors the kernel's bf16 MXU inputs."""
    D = x.shape[-1]
    cast = _round_bf16 if mixed else (lambda a: a)
    prec = lax.Precision.HIGHEST
    xc = cast(x)
    attn = jnp.einsum("pd,bnd->bpn", cast(p["part_tokens"]), xc,
                      precision=prec)
    attn = jax.nn.softmax(attn, axis=-1)
    y = jnp.einsum("bpn,bnd->bpd", cast(attn), xc,
                   precision=prec) / math.sqrt(D)
    mu = jnp.mean(y, axis=-1, keepdims=True)
    var = jnp.mean((y - mu) ** 2, axis=-1, keepdims=True)
    yn = (y - mu) / jnp.sqrt(var + 1e-5) * p["ln_g"][0] + p["ln_b"][0]
    h = jnp.dot(cast(yn), cast(p["w1"]), precision=prec) + p["b1"][0]
    h = 0.5 * h * (1.0 + lax.erf(h / math.sqrt(2.0)))
    return jnp.dot(cast(h), cast(p["w2"]), precision=prec) + p["b2"][0]


if __name__ == "__main__":
    B, N, dim, part_num = 4, 16, 32, 6

    key = jax.random.PRNGKey(0)
    kx, kp = jax.random.split(key)
    x = jax.random.normal(kx, (B, N, dim), jnp.float32)
    params = init_params(kp, dim, part_num)

    out = jax.block_until_ready(safl_forward(x, params))
    assert out.shape == (B, part_num, dim)

    # Check against a reference that mirrors the kernel's bf16 MXU operands
    # (f32 accumulation / elementwise), and loosely against pure f32.
    ref_mixed = safl_reference(x, params, mixed=True)
    ref_f32 = safl_reference(x, params, mixed=False)
    err_m = jnp.max(jnp.abs(out - ref_mixed))
    err_f = jnp.max(jnp.abs(out - ref_f32))
    assert jnp.allclose(out, ref_mixed, atol=2e-2, rtol=2e-2), \
        f"mixed-precision max abs err {err_m}"
    assert jnp.allclose(out, ref_f32, atol=1e-1, rtol=1e-1), \
        f"f32 max abs err {err_f}"

    print("KERNEL_OK")
</pallas_src>

<mosaic_0001>
module attributes {stable_mosaic.version = 11 : i64} {
  func.func @kernel(%arg0: i32, %arg1: memref<4x16x32xf32, #tpu.memory_space<vmem>>, %arg2: memref<8x32xbf16, #tpu.memory_space<vmem>>, %arg3: memref<1x32xf32, #tpu.memory_space<vmem>>, %arg4: memref<1x32xf32, #tpu.memory_space<vmem>>, %arg5: memref<32x128xbf16, #tpu.memory_space<vmem>>, %arg6: memref<1x128xf32, #tpu.memory_space<vmem>>, %arg7: memref<128x32xbf16, #tpu.memory_space<vmem>>, %arg8: memref<1x32xf32, #tpu.memory_space<vmem>>, %arg9: memref<32x32xf32, #tpu.memory_space<vmem>>) attributes {dimension_semantics = [#tpu.dimension_semantics<parallel>], iteration_bounds = array<i64: 1>, scalar_prefetch = 0 : i64, scratch_operands = 0 : i64, tpu.core_type = #tpu.core_type<tc>, window_params = [{transform_indices = @transform_0, window_bounds = array<i64: 4, 16, 32>}, {pipeline_mode = #tpu.pipeline_mode<synchronous>, transform_indices = @transform_1, window_bounds = array<i64: 8, 32>}, {pipeline_mode = #tpu.pipeline_mode<synchronous>, transform_indices = @transform_2, window_bounds = array<i64: 1, 32>}, {pipeline_mode = #tpu.pipeline_mode<synchronous>, transform_indices = @transform_3, window_bounds = array<i64: 1, 32>}, {pipeline_mode = #tpu.pipeline_mode<synchronous>, transform_indices = @transform_4, window_bounds = array<i64: 32, 128>}, {pipeline_mode = #tpu.pipeline_mode<synchronous>, transform_indices = @transform_5, window_bounds = array<i64: 1, 128>}, {pipeline_mode = #tpu.pipeline_mode<synchronous>, transform_indices = @transform_6, window_bounds = array<i64: 128, 32>}, {pipeline_mode = #tpu.pipeline_mode<synchronous>, transform_indices = @transform_7, window_bounds = array<i64: 1, 32>}, {transform_indices = @transform_8, window_bounds = array<i64: 32, 32>}]} {
    %c0 = arith.constant 0 : index
    %c0_0 = arith.constant 0 : index
    %c0_1 = arith.constant 0 : index
    %0 = vector.load %arg1[%c0, %c0_0, %c0_1] : memref<4x16x32xf32, #tpu.memory_space<vmem>>, vector<4x16x32xf32>
    %1 = arith.truncf %0 : vector<4x16x32xf32> to vector<4x16x32xbf16>
    %c0_2 = arith.constant 0 : index
    %c0_3 = arith.constant 0 : index
    %2 = vector.load %arg2[%c0_2, %c0_3] : memref<8x32xbf16, #tpu.memory_space<vmem>>, vector<8x32xbf16>
    "tpu.trace_start"() <{level = 10 : i32, message = "pd,bnd->bpn"}> : () -> ()
    %cst = arith.constant dense<0.000000e+00> : vector<4x16x8xf32>
    %3 = tpu.matmul %1, %2, %cst {dimension_numbers = #tpu.dot_dimension_numbers<[2], [1], [0, 1], [0], [0, 0, 0, 1, 1, 0], [], []>} : vector<4x16x32xbf16>, vector<8x32xbf16>, vector<4x16x8xf32> -> vector<4x16x8xf32>
    %4 = tpu.transpose %3, [0, 2, 1] : vector<4x16x8xf32> -> vector<4x8x16xf32>
    "tpu.trace_stop"() : () -> ()
    %cst_4 = arith.constant dense<0xFF800000> : vector<4x8xf32>
    %5 = vector.multi_reduction <maximumf>, %4, %cst_4 [2] : vector<4x8x16xf32> to vector<4x8xf32>
    %6 = vector.shape_cast %5 : vector<4x8xf32> to vector<4x8x1xf32>
    %7 = vector.broadcast %6 : vector<4x8x1xf32> to vector<4x8x16xf32>
    %8 = arith.subf %4, %7 : vector<4x8x16xf32>
    %9 = math.exp %8 : vector<4x8x16xf32>
    %cst_5 = arith.constant dense<0.000000e+00> : vector<4x8xf32>
    %10 = vector.multi_reduction <add>, %9, %cst_5 [2] : vector<4x8x16xf32> to vector<4x8xf32>
    %11 = vector.shape_cast %10 : vector<4x8xf32> to vector<4x8x1xf32>
    %12 = vector.broadcast %11 : vector<4x8x1xf32> to vector<4x8x16xf32>
    %13 = arith.divf %9, %12 : vector<4x8x16xf32>
    %14 = arith.truncf %13 : vector<4x8x16xf32> to vector<4x8x16xbf16>
    "tpu.trace_start"() <{level = 10 : i32, message = "bpn,bnd->bpd"}> : () -> ()
    %cst_6 = arith.constant dense<0.000000e+00> : vector<4x8x32xf32>
    %15 = tpu.matmul %14, %1, %cst_6 {dimension_numbers = #tpu.dot_dimension_numbers<[2], [1], [1], [2], [0, 0, 0, 1, 1, 2], [0], [0]>} : vector<4x8x16xbf16>, vector<4x16x32xbf16>, vector<4x8x32xf32> -> vector<4x8x32xf32>
    "tpu.trace_stop"() : () -> ()
    %cst_7 = arith.constant 0.176776692 : f32
    %16 = vector.broadcast %cst_7 : f32 to vector<4x8x32xf32>
    %17 = arith.mulf %15, %16 : vector<4x8x32xf32>
    %18 = vector.shape_cast %17 : vector<4x8x32xf32> to vector<32x32xf32>
    %cst_8 = arith.constant dense<0.000000e+00> : vector<32xf32>
    %19 = vector.multi_reduction <add>, %18, %cst_8 [1] : vector<32x32xf32> to vector<32xf32>
    %20 = vector.shape_cast %19 : vector<32xf32> to vector<32x1xf32>
    %cst_9 = arith.constant 3.200000e+01 : f32
    %21 = vector.broadcast %cst_9 : f32 to vector<32x1xf32>
    %22 = arith.divf %20, %21 : vector<32x1xf32>
    %23 = vector.broadcast %22 : vector<32x1xf32> to vector<32x32xf32>
    %24 = arith.subf %18, %23 : vector<32x32xf32>
    %25 = arith.mulf %24, %24 : vector<32x32xf32>
    %cst_10 = arith.constant dense<0.000000e+00> : vector<32xf32>
    %26 = vector.multi_reduction <add>, %25, %cst_10 [1] : vector<32x32xf32> to vector<32xf32>
    %27 = vector.shape_cast %26 : vector<32xf32> to vector<32x1xf32>
    %cst_11 = arith.constant 3.200000e+01 : f32
    %28 = vector.broadcast %cst_11 : f32 to vector<32x1xf32>
    %29 = arith.divf %27, %28 : vector<32x1xf32>
    %30 = vector.broadcast %22 : vector<32x1xf32> to vector<32x32xf32>
    %31 = arith.subf %18, %30 : vector<32x32xf32>
    %cst_12 = arith.constant 9.99999974E-6 : f32
    %32 = vector.broadcast %cst_12 : f32 to vector<32x1xf32>
    %33 = arith.addf %29, %32 : vector<32x1xf32>
    %34 = math.rsqrt %33 : vector<32x1xf32>
    %35 = vector.broadcast %34 : vector<32x1xf32> to vector<32x32xf32>
    %36 = arith.mulf %31, %35 : vector<32x32xf32>
    %c0_13 = arith.constant 0 : index
    %c0_14 = arith.constant 0 : index
    %37 = vector.load %arg3[%c0_13, %c0_14] : memref<1x32xf32, #tpu.memory_space<vmem>>, vector<1x32xf32>
    %38 = vector.broadcast %37 : vector<1x32xf32> to vector<32x32xf32>
    %39 = arith.mulf %36, %38 : vector<32x32xf32>
    %c0_15 = arith.constant 0 : index
    %c0_16 = arith.constant 0 : index
    %40 = vector.load %arg4[%c0_15, %c0_16] : memref<1x32xf32, #tpu.memory_space<vmem>>, vector<1x32xf32>
    %41 = vector.broadcast %40 : vector<1x32xf32> to vector<32x32xf32>
    %42 = arith.addf %39, %41 : vector<32x32xf32>
    %43 = arith.truncf %42 : vector<32x32xf32> to vector<32x32xbf16>
    %c0_17 = arith.constant 0 : index
    %c0_18 = arith.constant 0 : index
    %44 = vector.load %arg5[%c0_17, %c0_18] : memref<32x128xbf16, #tpu.memory_space<vmem>>, vector<32x128xbf16>
    %cst_19 = arith.constant dense<0.000000e+00> : vector<32x128xf32>
    %45 = tpu.matmul %43, %44, %cst_19 {dimension_numbers = #tpu.dot_dimension_numbers<[1], [0], [0], [1], [0, 0, 1, 1], [], []>} : vector<32x32xbf16>, vector<32x128xbf16>, vector<32x128xf32> -> vector<32x128xf32>
    %c0_20 = arith.constant 0 : index
    %c0_21 = arith.constant 0 : index
    %46 = vector.load %arg6[%c0_20, %c0_21] : memref<1x128xf32, #tpu.memory_space<vmem>>, vector<1x128xf32>
    %47 = vector.broadcast %46 : vector<1x128xf32> to vector<32x128xf32>
    %48 = arith.addf %45, %47 : vector<32x128xf32>
    %cst_22 = arith.constant 5.000000e-01 : f32
    %49 = vector.broadcast %cst_22 : f32 to vector<32x128xf32>
    %50 = arith.mulf %49, %48 : vector<32x128xf32>
    %cst_23 = arith.constant 0.707106769 : f32
    %51 = vector.broadcast %cst_23 : f32 to vector<32x128xf32>
    %52 = arith.mulf %48, %51 : vector<32x128xf32>
    %53 = math.erf %52 : vector<32x128xf32>
    %cst_24 = arith.constant 1.000000e+00 : f32
    %54 = vector.broadcast %cst_24 : f32 to vector<32x128xf32>
    %55 = arith.addf %54, %53 : vector<32x128xf32>
    %56 = arith.mulf %50, %55 : vector<32x128xf32>
    %57 = arith.truncf %56 : vector<32x128xf32> to vector<32x128xbf16>
    %c0_25 = arith.constant 0 : index
    %c0_26 = arith.constant 0 : index
    %58 = vector.load %arg7[%c0_25, %c0_26] : memref<128x32xbf16, #tpu.memory_space<vmem>>, vector<128x32xbf16>
    %cst_27 = arith.constant dense<0.000000e+00> : vector<32x32xf32>
    %59 = tpu.matmul %57, %58, %cst_27 {dimension_numbers = #tpu.dot_dimension_numbers<[1], [0], [0], [1], [0, 0, 1, 1], [], []>} : vector<32x128xbf16>, vector<128x32xbf16>, vector<32x32xf32> -> vector<32x32xf32>
    %c0_28 = arith.constant 0 : index
    %c0_29 = arith.constant 0 : index
    %60 = vector.load %arg8[%c0_28, %c0_29] : memref<1x32xf32, #tpu.memory_space<vmem>>, vector<1x32xf32>
    %61 = vector.broadcast %60 : vector<1x32xf32> to vector<32x32xf32>
    %62 = arith.addf %59, %61 : vector<32x32xf32>
    %c0_30 = arith.constant 0 : index
    %c0_31 = arith.constant 0 : index
    %63 = vector.load %arg9[%c0_30, %c0_31] : memref<32x32xf32, #tpu.memory_space<vmem>>, vector<32x32xf32>
    tpu.vector_store %arg9[%c0_30, %c0_31], %62 {strides = array<i32>} : memref<32x32xf32, #tpu.memory_space<vmem>>, vector<32x32xf32>,
    return
  }
  func.func @transform_0(%arg0: i32) -> (i32, i32, i32) {
    %c0_i32 = arith.constant 0 : i32
    %c0_i32_0 = arith.constant 0 : i32
    %c0_i32_1 = arith.constant 0 : i32
    return %arg0, %c0_i32, %c0_i32_0 : i32, i32, i32
  }
  func.func @transform_1(%arg0: i32) -> (i32, i32) {
    %c0_i32 = arith.constant 0 : i32
    %c0_i32_0 = arith.constant 0 : i32
    %c0_i32_1 = arith.constant 0 : i32
    return %c0_i32, %c0_i32_0 : i32, i32
  }
  func.func @transform_2(%arg0: i32) -> (i32, i32) {
    %c0_i32 = arith.constant 0 : i32
    %c0_i32_0 = arith.constant 0 : i32
    %c0_i32_1 = arith.constant 0 : i32
    return %c0_i32, %c0_i32_0 : i32, i32
  }
  func.func @transform_3(%arg0: i32) -> (i32, i32) {
    %c0_i32 = arith.constant 0 : i32
    %c0_i32_0 = arith.constant 0 : i32
    %c0_i32_1 = arith.constant 0 : i32
    return %c0_i32, %c0_i32_0 : i32, i32
  }
  func.func @transform_4(%arg0: i32) -> (i32, i32) {
    %c0_i32 = arith.constant 0 : i32
    %c0_i32_0 = arith.constant 0 : i32
    %c0_i32_1 = arith.constant 0 : i32
    return %c0_i32, %c0_i32_0 : i32, i32
  }
  func.func @transform_5(%arg0: i32) -> (i32, i32) {
    %c0_i32 = arith.constant 0 : i32
    %c0_i32_0 = arith.constant 0 : i32
    %c0_i32_1 = arith.constant 0 : i32
    return %c0_i32, %c0_i32_0 : i32, i32
  }
  func.func @transform_6(%arg0: i32) -> (i32, i32) {
    %c0_i32 = arith.constant 0 : i32
    %c0_i32_0 = arith.constant 0 : i32
    %c0_i32_1 = arith.constant 0 : i32
    return %c0_i32, %c0_i32_0 : i32, i32
  }
  func.func @transform_7(%arg0: i32) -> (i32, i32) {
    %c0_i32 = arith.constant 0 : i32
    %c0_i32_0 = arith.constant 0 : i32
    %c0_i32_1 = arith.constant 0 : i32
    return %c0_i32, %c0_i32_0 : i32, i32
  }
  func.func @transform_8(%arg0: i32) -> (i32, i32) {
    %c0_i32 = arith.constant 0 : i32
    %c0_i32_0 = arith.constant 0 : i32
    return %arg0, %c0_i32 : i32, i32
  }
}

</mosaic_0001>

<llo_original>
// kernel: tpu_custom_call.1
$region0: #{tpu_custom_call.1}
  #allocation0 [shape = 'u32[]', space=smem, size = 0x4, offset = 0x4, fixed_abs, tag = 'smem constant byte address 0x4 - core index']
  #allocation1 [shape = 'u32[144,128]{1,0:T(1,128)}', space=vmem, size = 0x12000, scoped, tag = 'internal scratch']
  %s0 = inlined_call_operand.vmem [shape: f32[4,16,32], index: 0, kind: input, shape index: {}]
  %s1 = inlined_call_operand.hbm [shape: bf16[8,32], index: 1, kind: input, shape index: {}]
  %s2 = inlined_call_operand.vmem [shape: f32[1,32], index: 2, kind: input, shape index: {}]
  %s3 = inlined_call_operand.vmem [shape: f32[1,32], index: 3, kind: input, shape index: {}]
  %s4 = inlined_call_operand.vmem [shape: bf16[32,128], index: 4, kind: input, shape index: {}]
  %s5 = inlined_call_operand.vmem [shape: f32[1,128], index: 5, kind: input, shape index: {}]
  %s6 = inlined_call_operand.vmem [shape: bf16[128,32], index: 6, kind: input, shape index: {}]
  %s7 = inlined_call_operand.vmem [shape: f32[1,32], index: 7, kind: input, shape index: {}]
  %s8 = inlined_call_operand.hbm [shape: f32[32,32], index: 8, kind: output, shape index: {}]
  %s9 = sld [smem:[#allocation0]]
  $region46: #{tpu_custom_call.1} parent=0
    _
  %s11 = ssub.s32 1, %s9
  %s12 = scalar_select 0, %s11, %s9
  $region1: #{tpu_custom_call.1} parent=0
    #allocation2 [shape = 'u8[2048]{0}', space=vmem, size = 0x800, scoped, tag = 'input window, operand 1, single buffered']
    #allocation3 [shape = 's32[1]{0}', space=sflag, size = 0x4, scoped, tag = 'scoped memory for tpu_custom_call.1']
    #allocation4 [shape = 's32[1]{0}', space=sflag, size = 0x4, scoped, tag = 'scoped memory for tpu_custom_call.1']
    #allocation5 [shape = 'u8[16384]{0}', space=vmem, size = 0x4000, scoped, tag = 'output window, operand 0, single buffered']
    %13 = vsyncpa [#allocation3], 0
    %14 = vsyncpa [#allocation4], 0
    // Predicated region
    $region2: #{tpu_custom_call.1} parent=1 // pred_check
      _
    $region3: #{tpu_custom_call.1} parent=1 // pred_check_branch
      %16 = sbr.rel (0) target = $region5
    $region4: #{tpu_custom_call.1} parent=1 // pred_region
      _
    $region5: #{tpu_custom_call.1} parent=1 // pred_fallthru
      _
    // Predicated region
    $region6: #{tpu_custom_call.1} parent=1 // pred_check
      _
    $region7: #{tpu_custom_call.1} parent=1 // pred_check_branch
      %18 = sbr.rel (0) target = $region9
    $region8: #{tpu_custom_call.1} parent=1 // pred_region
      %s20 = ssub.s32 64, 64
      %21 = vsyncadd [#allocation3], %s20
      %s23 = sshll.u32 [#allocation2], 4
      %s24 = int_to_ptr.vmem [resolvable:$true] %s23
      %26 = dma.hbm_to_vmem [thread:$0]  %s1, 64, %s24, [#allocation3]
    $region9: #{tpu_custom_call.1} parent=1 // pred_fallthru
      _
    // Predicated region
    $region10: #{tpu_custom_call.1} parent=1 // pred_check
      _
    $region11: #{tpu_custom_call.1} parent=1 // pred_check_branch
      %28 = sbr.rel (0) target = $region13
    $region12: #{tpu_custom_call.1} parent=1 // pred_region
      _
    $region13: #{tpu_custom_call.1} parent=1 // pred_fallthru
      _
    // Predicated region
    $region14: #{tpu_custom_call.1} parent=1 // pred_check
      _
    $region15: #{tpu_custom_call.1} parent=1 // pred_check_branch
      %30 = sbr.rel (0) target = $region17
    $region16: #{tpu_custom_call.1} parent=1 // pred_region
      _
    $region17: #{tpu_custom_call.1} parent=1 // pred_fallthru
      _
    // Predicated region
    $region18: #{tpu_custom_call.1} parent=1 // pred_check
      _
    $region19: #{tpu_custom_call.1} parent=1 // pred_check_branch
      %32 = sbr.rel (0) target = $region21
    $region20: #{tpu_custom_call.1} parent=1 // pred_region
      _
    $region21: #{tpu_custom_call.1} parent=1 // pred_fallthru
      _
    // Predicated region
    $region22: #{tpu_custom_call.1} parent=1 // pred_check
      _
    $region23: #{tpu_custom_call.1} parent=1 // pred_check_branch
      %34 = sbr.rel (0) target = $region25
    $region24: #{tpu_custom_call.1} parent=1 // pred_region
      _
    $region25: #{tpu_custom_call.1} parent=1 // pred_fallthru
      _
    // Predicated region
    $region26: #{tpu_custom_call.1} parent=1 // pred_check
      _
    $region27: #{tpu_custom_call.1} parent=1 // pred_check_branch
      %36 = sbr.rel (0) target = $region29
    $region28: #{tpu_custom_call.1} parent=1 // pred_region
      _
    $region29: #{tpu_custom_call.1} parent=1 // pred_fallthru
      _
    // Predicated region
    $region30: #{tpu_custom_call.1} parent=1 // pred_check
      _
    $region31: #{tpu_custom_call.1} parent=1 // pred_check_branch
      %38 = sbr.rel (0) target = $region33
    $region32: #{tpu_custom_call.1} parent=1 // pred_region
      _
    $region33: #{tpu_custom_call.1} parent=1 // pred_fallthru
      _
    // Predicated region
    $region34: #{tpu_custom_call.1} parent=1 // pred_check
      _
    $region35: #{tpu_custom_call.1} parent=1 // pred_check_branch
      %40 = sbr.rel (0) target = $region37
    $region36: #{tpu_custom_call.1} parent=1 // pred_region
      %41 = dma.done [#allocation3], 64
    $region37: #{tpu_custom_call.1} parent=1 // pred_fallthru
      _
    %v43 = vld [vmem:[%s0] sm:$0xff]
    %v44 = vld [vmem:[%s0 + $0x8] sm:$0xff]
    %v45 = vld [vmem:[%s0 + $0x10] sm:$0xff]
    %v46 = vld [vmem:[%s0 + $0x18] sm:$0xff]
    %v47 = vld [vmem:[%s0 + $0x20] sm:$0xff]
    %v48 = vld [vmem:[%s0 + $0x28] sm:$0xff]
    %v49 = vld [vmem:[%s0 + $0x30] sm:$0xff]
    %v50 = vld [vmem:[%s0 + $0x38] sm:$0xff]
    %v51 = vpack.c.bf16 %v44, %v43
    %v52 = vpack.c.bf16 %v46, %v45
    %v53 = vpack.c.bf16 %v48, %v47
    %v54 = vpack.c.bf16 %v50, %v49
    %v55 = vld [vmem:[#allocation2] sm:$0xf]
    %vm56 = vcmask 261120
    %v58 = vsel %vm56, %v51, 0
    %v61 = vsel %vm56, %v52, 0
    %v64 = vsel %vm56, %v53, 0
    %v67 = vsel %vm56, %v54, 0
    %v70 = vsel %vm56, %v55, 0
    %72 = vmatprep.subr.bf16.mxu0 0
    %73 = vmatpush1.bf16.xpose.msra.mxu0 %v70
    %74 = vmatprep.subr.bf16.mxu0 0
    %75 = vmatpush1.bf16.xpose.msra.mxu0 0
    %76 = vmatprep.subr.bf16.mxu0 0
    %77 = vmatpush1.bf16.xpose.msra.mxu0 0
    %78 = vmatprep.subr.bf16.mxu0 0
    %79 = vmatpush1.bf16.xpose.msra.mxu0 0
    %80 = vmatprep.subr.bf16.mxu0 0
    %81 = vmatpush1.bf16.xpose.msra.mxu0 0
    %82 = vmatprep.subr.bf16.mxu0 0
    %83 = vmatpush1.bf16.xpose.msra.mxu0 0
    %84 = vmatprep.subr.bf16.mxu0 0
    %85 = vmatpush1.bf16.xpose.msra.mxu0 0
    %86 = vmatprep.subr.bf16.mxu0 0
    %87 = vmatpush1.bf16.xpose.msra.mxu0 0
    %88 = vmatprep.subr.bf16.mxu0 0
    %89 = vmatpush1.bf16.xpose.msra.mxu0 0
    %90 = vmatprep.subr.bf16.mxu0 0
    %91 = vmatpush1.bf16.xpose.msra.mxu0 0
    %92 = vmatprep.subr.bf16.mxu0 0
    %93 = vmatpush1.bf16.xpose.msra.mxu0 0
    %94 = vmatprep.subr.bf16.mxu0 0
    %95 = vmatpush1.bf16.xpose.msra.mxu0 0
    %96 = vmatprep.subr.bf16.mxu0 0
    %97 = vmatpush1.bf16.xpose.msra.mxu0 0
    %98 = vmatprep.subr.bf16.mxu0 0
    %99 = vmatpush1.bf16.xpose.msra.mxu0 0
    %100 = vmatprep.subr.bf16.mxu0 0
    %101 = vmatpush1.bf16.xpose.msra.mxu0 0
    %102 = vmatprep.subr.bf16.mxu0 0
    %103 = vmatpush1.bf16.xpose.msra.mxu0 0
    %104 = vmatprep.mubr.bf16.mxu0 0
    %105 = vmatmul.mubr.bf16.gmra.mrb[0].mxu0 %v58
    %v106 = vpop.f32.mrb[0].mxu0
    %v107 = vadd.f32 0.0, %v106
    %v108 = vpop.f32.mrb[0].mxu0
    %v109 = vpop.f32.mrb[0].mxu0
    %v110 = vadd.f32 0.0, %v109
    %v111 = vpop.f32.mrb[0].mxu0
    %112 = vmatprep.mubr.bf16.mxu0 0
    %113 = vmatmul.mubr.bf16.gmra.mrb[0].mxu0 %v61
    %v114 = vpop.f32.mrb[0].mxu0
    %v115 = vadd.f32 0.0, %v114
    %v116 = vpop.f32.mrb[0].mxu0
    %v117 = vpop.f32.mrb[0].mxu0
    %v118 = vadd.f32 0.0, %v117
    %v119 = vpop.f32.mrb[0].mxu0
    %120 = vmatprep.mubr.bf16.mxu0 0
    %121 = vmatmul.mubr.bf16.gmra.mrb[0].mxu0 %v64
    %v122 = vpop.f32.mrb[0].mxu0
    %v123 = vadd.f32 0.0, %v122
    %v124 = vpop.f32.mrb[0].mxu0
    %v125 = vpop.f32.mrb[0].mxu0
    %v126 = vadd.f32 0.0, %v125
    %v127 = vpop.f32.mrb[0].mxu0
    %128 = vmatprep.mubr.bf16.mxu0 0
    %129 = vmatmul.mubr.bf16.gmra.mrb[0].mxu0 %v67
    %v130 = vpop.f32.mrb[0].mxu0
    %v131 = vadd.f32 0.0, %v130
    %v132 = vpop.f32.mrb[0].mxu0
    %v133 = vpop.f32.mrb[0].mxu0
    %v134 = vadd.f32 0.0, %v133
    %v135 = vpop.f32.mrb[0].mxu0
    %136 = vdwg.mxu0
    %137 = vxpose.xlu0.b32.start [1/16] %v107, 128
    %138 = vxpose.xlu0.b32.cont [2/16] %v110, 128
    %139 = vxpose.xlu0.b32.cont [3/16] 0.0, 128
    %140 = vxpose.xlu0.b32.cont [4/16] 0.0, 128
    %141 = vxpose.xlu0.b32.cont [5/16] 0.0, 128
    %142 = vxpose.xlu0.b32.cont [6/16] 0.0, 128
    %143 = vxpose.xlu0.b32.cont [7/16] 0.0, 128
    %144 = vxpose.xlu0.b32.cont [8/16] 0.0, 128
    %145 = vxpose.xlu0.b32.cont [9/16] 0.0, 128
    %146 = vxpose.xlu0.b32.cont [10/16] 0.0, 128
    %147 = vxpose.xlu0.b32.cont [11/16] 0.0, 128
    %148 = vxpose.xlu0.b32.cont [12/16] 0.0, 128
    %149 = vxpose.xlu0.b32.cont [13/16] 0.0, 128
    %150 = vxpose.xlu0.b32.cont [14/16] 0.0, 128
    %151 = vxpose.xlu0.b32.cont [15/16] 0.0, 128
    %152 = vxpose.xlu0.b32.end [16/16] 0.0, 128
    %v153 = vpop.trf.xlu0
    %v154 = vpop.trf.xlu0
    %v155 = vpop.trf.xlu0
    %v156 = vpop.trf.xlu0
    %v157 = vpop.trf.xlu0
    %v158 = vpop.trf.xlu0
    %v159 = vpop.trf.xlu0
    %v160 = vpop.trf.xlu0
    %v161 = vpop.trf.xlu0
    %v162 = vpop.trf.xlu0
    %v163 = vpop.trf.xlu0
    %v164 = vpop.trf.xlu0
    %v165 = vpop.trf.xlu0
    %v166 = vpop.trf.xlu0
    %v167 = vpop.trf.xlu0
    %v168 = vpop.trf.xlu0
    %169 = vxpose.xlu0.b32.start [1/16] %v115, 128
    %170 = vxpose.xlu0.b32.cont [2/16] %v118, 128
    %171 = vxpose.xlu0.b32.cont [3/16] 0.0, 128
    %172 = vxpose.xlu0.b32.cont [4/16] 0.0, 128
    %173 = vxpose.xlu0.b32.cont [5/16] 0.0, 128
    %174 = vxpose.xlu0.b32.cont [6/16] 0.0, 128
    %175 = vxpose.xlu0.b32.cont [7/16] 0.0, 128
    %176 = vxpose.xlu0.b32.cont [8/16] 0.0, 128
    %177 = vxpose.xlu0.b32.cont [9/16] 0.0, 128
    %178 = vxpose.xlu0.b32.cont [10/16] 0.0, 128
    %179 = vxpose.xlu0.b32.cont [11/16] 0.0, 128
    %180 = vxpose.xlu0.b32.cont [12/16] 0.0, 128
    %181 = vxpose.xlu0.b32.cont [13/16] 0.0, 128
    %182 = vxpose.xlu0.b32.cont [14/16] 0.0, 128
    %183 = vxpose.xlu0.b32.cont [15/16] 0.0, 128
    %184 = vxpose.xlu0.b32.end [16/16] 0.0, 128
    %v185 = vpop.trf.xlu0
    %v186 = vpop.trf.xlu0
    %v187 = vpop.trf.xlu0
    %v188 = vpop.trf.xlu0
    %v189 = vpop.trf.xlu0
    %v190 = vpop.trf.xlu0
    %v191 = vpop.trf.xlu0
    %v192 = vpop.trf.xlu0
    %v193 = vpop.trf.xlu0
    %v194 = vpop.trf.xlu0
    %v195 = vpop.trf.xlu0
    %v196 = vpop.trf.xlu0
    %v197 = vpop.trf.xlu0
    %v198 = vpop.trf.xlu0
    %v199 = vpop.trf.xlu0
    %v200 = vpop.trf.xlu0
    %201 = vxpose.xlu0.b32.start [1/16] %v123, 128
    %202 = vxpose.xlu0.b32.cont [2/16] %v126, 128
    %203 = vxpose.xlu0.b32.cont [3/16] 0.0, 128
    %204 = vxpose.xlu0.b32.cont [4/16] 0.0, 128
    %205 = vxpose.xlu0.b32.cont [5/16] 0.0, 128
    %206 = vxpose.xlu0.b32.cont [6/16] 0.0, 128
    %207 = vxpose.xlu0.b32.cont [7/16] 0.0, 128
    %208 = vxpose.xlu0.b32.cont [8/16] 0.0, 128
    %209 = vxpose.xlu0.b32.cont [9/16] 0.0, 128
    %210 = vxpose.xlu0.b32.cont [10/16] 0.0, 128
    %211 = vxpose.xlu0.b32.cont [11/16] 0.0, 128
    %212 = vxpose.xlu0.b32.cont [12/16] 0.0, 128
    %213 = vxpose.xlu0.b32.cont [13/16] 0.0, 128
    %214 = vxpose.xlu0.b32.cont [14/16] 0.0, 128
    %215 = vxpose.xlu0.b32.cont [15/16] 0.0, 128
    %216 = vxpose.xlu0.b32.end [16/16] 0.0, 128
    %v217 = vpop.trf.xlu0
    %v218 = vpop.trf.xlu0
    %v219 = vpop.trf.xlu0
    %v220 = vpop.trf.xlu0
    %v221 = vpop.trf.xlu0
    %v222 = vpop.trf.xlu0
    %v223 = vpop.trf.xlu0
    %v224 = vpop.trf.xlu0
    %v225 = vpop.trf.xlu0
    %v226 = vpop.trf.xlu0
    %v227 = vpop.trf.xlu0
    %v228 = vpop.trf.xlu0
    %v229 = vpop.trf.xlu0
    %v230 = vpop.trf.xlu0
    %v231 = vpop.trf.xlu0
    %v232 = vpop.trf.xlu0
    %233 = vxpose.xlu0.b32.start [1/16] %v131, 128
    %234 = vxpose.xlu0.b32.cont [2/16] %v134, 128
    %235 = vxpose.xlu0.b32.cont [3/16] 0.0, 128
    %236 = vxpose.xlu0.b32.cont [4/16] 0.0, 128
    %237 = vxpose.xlu0.b32.cont [5/16] 0.0, 128
    %238 = vxpose.xlu0.b32.cont [6/16] 0.0, 128
    %239 = vxpose.xlu0.b32.cont [7/16] 0.0, 128
    %240 = vxpose.xlu0.b32.cont [8/16] 0.0, 128
    %241 = vxpose.xlu0.b32.cont [9/16] 0.0, 128
    %242 = vxpose.xlu0.b32.cont [10/16] 0.0, 128
    %243 = vxpose.xlu0.b32.cont [11/16] 0.0, 128
    %244 = vxpose.xlu0.b32.cont [12/16] 0.0, 128
    %245 = vxpose.xlu0.b32.cont [13/16] 0.0, 128
    %246 = vxpose.xlu0.b32.cont [14/16] 0.0, 128
    %247 = vxpose.xlu0.b32.cont [15/16] 0.0, 128
    %248 = vxpose.xlu0.b32.end [16/16] 0.0, 128
    %v249 = vpop.trf.xlu0
    %v250 = vpop.trf.xlu0
    %v251 = vpop.trf.xlu0
    %v252 = vpop.trf.xlu0
    %v253 = vpop.trf.xlu0
    %v254 = vpop.trf.xlu0
    %v255 = vpop.trf.xlu0
    %v256 = vpop.trf.xlu0
    %v257 = vpop.trf.xlu0
    %v258 = vpop.trf.xlu0
    %v259 = vpop.trf.xlu0
    %v260 = vpop.trf.xlu0
    %v261 = vpop.trf.xlu0
    %v262 = vpop.trf.xlu0
    %v263 = vpop.trf.xlu0
    %v264 = vpop.trf.xlu0
    %vm265 = vcmask 130048
    %v266 = vsel %vm265, %v153, -inf
    %267 = vmax.xlane.f32.xlu0 %v266
    %v268 = vpop.xlane.xlu0 %267
    %v269 = vsel %vm265, %v185, -inf
    %270 = vmax.xlane.f32.xlu0 %v269
    %v271 = vpop.xlane.xlu0 %270
    %v272 = vsel %vm265, %v217, -inf
    %273 = vmax.xlane.f32.xlu0 %v272
    %v274 = vpop.xlane.xlu0 %273
    %v275 = vsel %vm265, %v249, -inf
    %276 = vmax.xlane.f32.xlu0 %v275
    %v277 = vpop.xlane.xlu0 %276
    %v278 = vsub.f32 %v153, %v268
    %v279 = vsub.f32 %v185, %v271
    %v280 = vsub.f32 %v217, %v274
    %v281 = vsub.f32 %v249, %v277
    %v282 = vmul.f32 %v278, 1.442695
    %v283 = vpow.pop %v282
    %v284 = vmul.f32 %v279, 1.442695
    %v285 = vpow.pop %v284
    %v286 = vmul.f32 %v280, 1.442695
    %v287 = vpow.pop %v286
    %v288 = vmul.f32 %v281, 1.442695
    %v289 = vpow.pop %v288
    %v290 = vsel %vm265, %v283, 0.0
    %291 = vadd.xlane.f32.xlu0 %v290
    %v292 = vpop.xlane.xlu0 %291
    %v293 = vsel %vm265, %v285, 0.0
    %294 = vadd.xlane.f32.xlu0 %v293
    %v295 = vpop.xlane.xlu0 %294
    %v296 = vsel %vm265, %v287, 0.0
    %297 = vadd.xlane.f32.xlu0 %v296
    %v298 = vpop.xlane.xlu0 %297
    %v299 = vsel %vm265, %v289, 0.0
    %300 = vadd.xlane.f32.xlu0 %v299
    %v301 = vpop.xlane.xlu0 %300
    %v302 = vrcp.pop %v292
    %v303 = vmul.f32 %v283, %v302
    %v304 = vrcp.pop %v295
    %v305 = vmul.f32 %v285, %v304
    %v306 = vrcp.pop %v298
    %v307 = vmul.f32 %v287, %v306
    %v308 = vrcp.pop %v301
    %v309 = vmul.f32 %v289, %v308
    %v310 = vpack.c.bf16 %v303, %v303
    %v311 = vpack.c.bf16 %v305, %v305
    %v312 = vpack.c.bf16 %v307, %v307
    %v313 = vpack.c.bf16 %v309, %v309
    %v315 = vsel %vm265, %v310, 0
    %317 = vmatprep.subr.bf16.mxu0 0
    %318 = vmatpush1.bf16.msra.mxu0 %v51
    %319 = vmatprep.subr.bf16.mxu0 0
    %320 = vmatpush1.bf16.msra.mxu0 0
    %321 = vmatprep.subr.bf16.mxu0 0
    %322 = vmatpush1.bf16.msra.mxu0 0
    %323 = vmatprep.subr.bf16.mxu0 0
    %324 = vmatpush1.bf16.msra.mxu0 0
    %325 = vmatprep.subr.bf16.mxu0 0
    %326 = vmatpush1.bf16.msra.mxu0 0
    %327 = vmatprep.subr.bf16.mxu0 0
    %328 = vmatpush1.bf16.msra.mxu0 0
    %329 = vmatprep.subr.bf16.mxu0 0
    %330 = vmatpush1.bf16.msra.mxu0 0
    %331 = vmatprep.subr.bf16.mxu0 0
    %332 = vmatpush1.bf16.msra.mxu0 0
    %333 = vmatprep.subr.bf16.mxu0 0
    %334 = vmatpush1.bf16.msra.mxu0 0
    %335 = vmatprep.subr.bf16.mxu0 0
    %336 = vmatpush1.bf16.msra.mxu0 0
    %337 = vmatprep.subr.bf16.mxu0 0
    %338 = vmatpush1.bf16.msra.mxu0 0
    %339 = vmatprep.subr.bf16.mxu0 0
    %340 = vmatpush1.bf16.msra.mxu0 0
    %341 = vmatprep.subr.bf16.mxu0 0
    %342 = vmatpush1.bf16.msra.mxu0 0
    %343 = vmatprep.subr.bf16.mxu0 0
    %344 = vmatpush1.bf16.msra.mxu0 0
    %345 = vmatprep.subr.bf16.mxu0 0
    %346 = vmatpush1.bf16.msra.mxu0 0
    %347 = vmatprep.subr.bf16.mxu0 0
    %348 = vmatpush1.bf16.msra.mxu0 0
    %349 = vmatprep.mubr.bf16.mxu0 0
    %350 = vmatmul.mubr.bf16.gmra.mrb[0].mxu0 %v315
    %v351 = vpop.f32.mrb[0].mxu0
    %v352 = vadd.f32 0.0, %v351
    %v353 = vpop.f32.mrb[0].mxu0
    %v354 = vpop.f32.mrb[0].mxu0
    %v355 = vpop.f32.mrb[0].mxu0
    %356 = vdwg.mxu0
    %v358 = vsel %vm265, %v311, 0
    %360 = vmatprep.subr.bf16.mxu0 0
    %361 = vmatpush1.bf16.msra.mxu0 %v52
    %362 = vmatprep.subr.bf16.mxu0 0
    %363 = vmatpush1.bf16.msra.mxu0 0
    %364 = vmatprep.subr.bf16.mxu0 0
    %365 = vmatpush1.bf16.msra.mxu0 0
    %366 = vmatprep.subr.bf16.mxu0 0
    %367 = vmatpush1.bf16.msra.mxu0 0
    %368 = vmatprep.subr.bf16.mxu0 0
    %369 = vmatpush1.bf16.msra.mxu0 0
    %370 = vmatprep.subr.bf16.mxu0 0
    %371 = vmatpush1.bf16.msra.mxu0 0
    %372 = vmatprep.subr.bf16.mxu0 0
    %373 = vmatpush1.bf16.msra.mxu0 0
    %374 = vmatprep.subr.bf16.mxu0 0
    %375 = vmatpush1.bf16.msra.mxu0 0
    %376 = vmatprep.subr.bf16.mxu0 0
    %377 = vmatpush1.bf16.msra.mxu0 0
    %378 = vmatprep.subr.bf16.mxu0 0
    %379 = vmatpush1.bf16.msra.mxu0 0
    %380 = vmatprep.subr.bf16.mxu0 0
    %381 = vmatpush1.bf16.msra.mxu0 0
    %382 = vmatprep.subr.bf16.mxu0 0
    %383 = vmatpush1.bf16.msra.mxu0 0
    %384 = vmatprep.subr.bf16.mxu0 0
    %385 = vmatpush1.bf16.msra.mxu0 0
    %386 = vmatprep.subr.bf16.mxu0 0
    %387 = vmatpush1.bf16.msra.mxu0 0
    %388 = vmatprep.subr.bf16.mxu0 0
    %389 = vmatpush1.bf16.msra.mxu0 0
    %390 = vmatprep.subr.bf16.mxu0 0
    %391 = vmatpush1.bf16.msra.mxu0 0
    %392 = vmatprep.mubr.bf16.mxu0 0
    %393 = vmatmul.mubr.bf16.gmra.mrb[0].mxu0 %v358
    %v394 = vpop.f32.mrb[0].mxu0
    %v395 = vadd.f32 0.0, %v394
    %v396 = vpop.f32.mrb[0].mxu0
    %v397 = vpop.f32.mrb[0].mxu0
    %v398 = vpop.f32.mrb[0].mxu0
    %399 = vdwg.mxu0
    %v401 = vsel %vm265, %v312, 0
    %403 = vmatprep.subr.bf16.mxu0 0
    %404 = vmatpush1.bf16.msra.mxu0 %v53
    %405 = vmatprep.subr.bf16.mxu0 0
    %406 = vmatpush1.bf16.msra.mxu0 0
    %407 = vmatprep.subr.bf16.mxu0 0
    %408 = vmatpush1.bf16.msra.mxu0 0
    %409 = vmatprep.subr.bf16.mxu0 0
    %410 = vmatpush1.bf16.msra.mxu0 0
    %411 = vmatprep.subr.bf16.mxu0 0
    %412 = vmatpush1.bf16.msra.mxu0 0
    %413 = vmatprep.subr.bf16.mxu0 0
    %414 = vmatpush1.bf16.msra.mxu0 0
    %415 = vmatprep.subr.bf16.mxu0 0
    %416 = vmatpush1.bf16.msra.mxu0 0
    %417 = vmatprep.subr.bf16.mxu0 0
    %418 = vmatpush1.bf16.msra.mxu0 0
    %419 = vmatprep.subr.bf16.mxu0 0
    %420 = vmatpush1.bf16.msra.mxu0 0
    %421 = vmatprep.subr.bf16.mxu0 0
    %422 = vmatpush1.bf16.msra.mxu0 0
    %423 = vmatprep.subr.bf16.mxu0 0
    %424 = vmatpush1.bf16.msra.mxu0 0
    %425 = vmatprep.subr.bf16.mxu0 0
    %426 = vmatpush1.bf16.msra.mxu0 0
    %427 = vmatprep.subr.bf16.mxu0 0
    %428 = vmatpush1.bf16.msra.mxu0 0
    %429 = vmatprep.subr.bf16.mxu0 0
    %430 = vmatpush1.bf16.msra.mxu0 0
    %431 = vmatprep.subr.bf16.mxu0 0
    %432 = vmatpush1.bf16.msra.mxu0 0
    %433 = vmatprep.subr.bf16.mxu0 0
    %434 = vmatpush1.bf16.msra.mxu0 0
    %435 = vmatprep.mubr.bf16.mxu0 0
    %436 = vmatmul.mubr.bf16.gmra.mrb[0].mxu0 %v401
    %v437 = vpop.f32.mrb[0].mxu0
    %v438 = vadd.f32 0.0, %v437
    %v439 = vpop.f32.mrb[0].mxu0
    %v440 = vpop.f32.mrb[0].mxu0
    %v441 = vpop.f32.mrb[0].mxu0
    %442 = vdwg.mxu0
    %v444 = vsel %vm265, %v313, 0
    %446 = vmatprep.subr.bf16.mxu0 0
    %447 = vmatpush1.bf16.msra.mxu0 %v54
    %448 = vmatprep.subr.bf16.mxu0 0
    %449 = vmatpush1.bf16.msra.mxu0 0
    %450 = vmatprep.subr.bf16.mxu0 0
    %451 = vmatpush1.bf16.msra.mxu0 0
    %452 = vmatprep.subr.bf16.mxu0 0
    %453 = vmatpush1.bf16.msra.mxu0 0
    %454 = vmatprep.subr.bf16.mxu0 0
    %455 = vmatpush1.bf16.msra.mxu0 0
    %456 = vmatprep.subr.bf16.mxu0 0
    %457 = vmatpush1.bf16.msra.mxu0 0
    %458 = vmatprep.subr.bf16.mxu0 0
    %459 = vmatpush1.bf16.msra.mxu0 0
    %460 = vmatprep.subr.bf16.mxu0 0
    %461 = vmatpush1.bf16.msra.mxu0 0
    %462 = vmatprep.subr.bf16.mxu0 0
    %463 = vmatpush1.bf16.msra.mxu0 0
    %464 = vmatprep.subr.bf16.mxu0 0
    %465 = vmatpush1.bf16.msra.mxu0 0
    %466 = vmatprep.subr.bf16.mxu0 0
    %467 = vmatpush1.bf16.msra.mxu0 0
    %468 = vmatprep.subr.bf16.mxu0 0
    %469 = vmatpush1.bf16.msra.mxu0 0
    %470 = vmatprep.subr.bf16.mxu0 0
    %471 = vmatpush1.bf16.msra.mxu0 0
    %472 = vmatprep.subr.bf16.mxu0 0
    %473 = vmatpush1.bf16.msra.mxu0 0
    %474 = vmatprep.subr.bf16.mxu0 0
    %475 = vmatpush1.bf16.msra.mxu0 0
    %476 = vmatprep.subr.bf16.mxu0 0
    %477 = vmatpush1.bf16.msra.mxu0 0
    %478 = vmatprep.mubr.bf16.mxu0 0
    %479 = vmatmul.mubr.bf16.gmra.mrb[0].mxu0 %v444
    %v480 = vpop.f32.mrb[0].mxu0
    %v481 = vadd.f32 0.0, %v480
    %v482 = vpop.f32.mrb[0].mxu0
    %v483 = vpop.f32.mrb[0].mxu0
    %v484 = vpop.f32.mrb[0].mxu0
    %485 = vdwg.mxu0
    %v486 = vmul.f32 %v352, 0.17677669
    %v487 = vmul.f32 %v395, 0.17677669
    %v488 = vmul.f32 %v438, 0.17677669
    %v489 = vmul.f32 %v481, 0.17677669
    %v490 = vsel %vm56, %v486, 0.0
    %491 = vadd.xlane.f32.xlu0 %v490
    %v492 = vpop.xlane.xlu0 %491
    %v493 = vsel %vm56, %v487, 0.0
    %494 = vadd.xlane.f32.xlu0 %v493
    %v495 = vpop.xlane.xlu0 %494
    %v496 = vsel %vm56, %v488, 0.0
    %497 = vadd.xlane.f32.xlu0 %v496
    %v498 = vpop.xlane.xlu0 %497
    %v499 = vsel %vm56, %v489, 0.0
    %500 = vadd.xlane.f32.xlu0 %v499
    %v501 = vpop.xlane.xlu0 %500
    %v502 = vrcp.pop 32.0
    %v503 = vmul.f32 %v492, %v502
    %v504 = vmul.f32 %v495, %v502
    %v505 = vmul.f32 %v498, %v502
    %v506 = vmul.f32 %v501, %v502
    %v507 = vsub.f32 %v486, %v503
    %v508 = vsub.f32 %v487, %v504
    %v509 = vsub.f32 %v488, %v505
    %v510 = vsub.f32 %v489, %v506
    %v511 = vmul.f32 %v507, %v507
    %v512 = vmul.f32 %v508, %v508
    %v513 = vmul.f32 %v509, %v509
    %v514 = vmul.f32 %v510, %v510
    %v515 = vsel %vm56, %v511, 0.0
    %516 = vadd.xlane.f32.xlu0 %v515
    %v517 = vpop.xlane.xlu0 %516
    %v518 = vsel %vm56, %v512, 0.0
    %519 = vadd.xlane.f32.xlu0 %v518
    %v520 = vpop.xlane.xlu0 %519
    %v521 = vsel %vm56, %v513, 0.0
    %522 = vadd.xlane.f32.xlu0 %v521
    %v523 = vpop.xlane.xlu0 %522
    %v524 = vsel %vm56, %v514, 0.0
    %525 = vadd.xlane.f32.xlu0 %v524
    %v526 = vpop.xlane.xlu0 %525
    %v527 = vmul.f32 %v517, %v502
    %v528 = vmul.f32 %v520, %v502
    %v529 = vmul.f32 %v523, %v502
    %v530 = vmul.f32 %v526, %v502
    %v531 = vadd.f32 %v527, 1e-05
    %v532 = vadd.f32 %v528, 1e-05
    %v533 = vadd.f32 %v529, 1e-05
    %v534 = vadd.f32 %v530, 1e-05
    %v535 = vrsqrt.pop %v531
    %v536 = vrsqrt.pop %v532
    %v537 = vrsqrt.pop %v533
    %v538 = vrsqrt.pop %v534
    %v539 = vmul.f32 %v507, %v535
    %v540 = vmul.f32 %v508, %v536
    %v541 = vmul.f32 %v509, %v537
    %v542 = vmul.f32 %v510, %v538
    %v543 = vld [vmem:[%s2] sm:$0x1]
    %v545 = vlaneseq
    %v546 = vshrl.u32 %v545, 7
    %v547 = vsub.s32 0, %v546
    %v548 = vrot.slane %v543, %v547
    %v550 = vmul.f32 %v539, %v548
    %v551 = vmul.f32 %v540, %v548
    %v552 = vmul.f32 %v541, %v548
    %v553 = vmul.f32 %v542, %v548
    %v554 = vld [vmem:[%s3] sm:$0x1]
    %v556 = vlaneseq
    %v557 = vshrl.u32 %v556, 7
    %v558 = vsub.s32 0, %v557
    %v559 = vrot.slane %v554, %v558
    %v561 = vadd.f32 %v550, %v559
    %v562 = vadd.f32 %v551, %v559
    %v563 = vadd.f32 %v552, %v559
    %v564 = vadd.f32 %v553, %v559
    %v565 = vpack.c.bf16 %v562, %v561
    %v566 = vpack.c.bf16 %v564, %v563
    %v567 = vld [vmem:[%s4] sm:$0xf]
    %v568 = vld [vmem:[%s4 + $0x4] sm:$0xf]
    %v569 = vld [vmem:[%s4 + $0x8] sm:$0xf]
    %v570 = vld [vmem:[%s4 + $0xc] sm:$0xf]
    %v571 = vld [vmem:[%s5] sm:$0x1]
    %v573 = vlaneseq
    %v574 = vshrl.u32 %v573, 7
    %v575 = vsub.s32 0, %v574
    %v576 = vrot.slane %v571, %v575
    %v582 = vunpack.c.l.b16 %v567
    %v583 = vunpack.c.l.b16 %v568
    %v584 = vunpack.c.l.b16 %v569
    %v585 = vunpack.c.l.b16 %v570
    %v586 = vpack.c.b16 %v583, %v582
    %v587 = vpack.c.b16 %v585, %v584
    %v591 = vsel %vm56, %v565, 0
    %v594 = vsel %vm56, %v566, 0
    %596 = vmatprep.subr.bf16.mxu0 0
    %597 = vmatpush1.bf16.msra.mxu0 %v586
    %598 = vmatprep.subr.bf16.mxu0 0
    %599 = vmatpush1.bf16.msra.mxu0 %v587
    %600 = vmatprep.subr.bf16.mxu0 0
    %601 = vmatpush1.bf16.msra.mxu0 0
    %602 = vmatprep.subr.bf16.mxu0 0
    %603 = vmatpush1.bf16.msra.mxu0 0
    %604 = vmatprep.subr.bf16.mxu0 0
    %605 = vmatpush1.bf16.msra.mxu0 0
    %606 = vmatprep.subr.bf16.mxu0 0
    %607 = vmatpush1.bf16.msra.mxu0 0
    %608 = vmatprep.subr.bf16.mxu0 0
    %609 = vmatpush1.bf16.msra.mxu0 0
    %610 = vmatprep.subr.bf16.mxu0 0
    %611 = vmatpush1.bf16.msra.mxu0 0
    %612 = vmatprep.subr.bf16.mxu0 0
    %613 = vmatpush1.bf16.msra.mxu0 0
    %614 = vmatprep.subr.bf16.mxu0 0
    %615 = vmatpush1.bf16.msra.mxu0 0
    %616 = vmatprep.subr.bf16.mxu0 0
    %617 = vmatpush1.bf16.msra.mxu0 0
    %618 = vmatprep.subr.bf16.mxu0 0
    %619 = vmatpush1.bf16.msra.mxu0 0
    %620 = vmatprep.subr.bf16.mxu0 0
    %621 = vmatpush1.bf16.msra.mxu0 0
    %622 = vmatprep.subr.bf16.mxu0 0
    %623 = vmatpush1.bf16.msra.mxu0 0
    %624 = vmatprep.subr.bf16.mxu0 0
    %625 = vmatpush1.bf16.msra.mxu0 0
    %626 = vmatprep.subr.bf16.mxu0 0
    %627 = vmatpush1.bf16.msra.mxu0 0
    %628 = vmatprep.mubr.bf16.mxu0 0
    %629 = vmatmul.mubr.bf16.gmra.mrb[0].mxu0 %v591
    %v630 = vpop.f32.mrb[0].mxu0
    %v631 = vadd.f32 %v576, %v630
    %v632 = vpop.f32.mrb[0].mxu0
    %v633 = vpop.f32.mrb[0].mxu0
    %v634 = vadd.f32 %v576, %v633
    %v635 = vpop.f32.mrb[0].mxu0
    %636 = vmatprep.mubr.bf16.mxu0 0
    %637 = vmatmul.mubr.bf16.gmra.mrb[0].mxu0 %v594
    %v638 = vpop.f32.mrb[0].mxu0
    %v639 = vadd.f32 %v576, %v638
    %v640 = vpop.f32.mrb[0].mxu0
    %v641 = vpop.f32.mrb[0].mxu0
    %v642 = vadd.f32 %v576, %v641
    %v643 = vpop.f32.mrb[0].mxu0
    %644 = vdwg.mxu0
    %v645 = vmul.f32 %v631, 0.5
    %v646 = vmul.f32 %v634, 0.5
    %v647 = vmul.f32 %v639, 0.5
    %v648 = vmul.f32 %v642, 0.5
    %v649 = vmul.f32 %v631, 0.70710677
    %v650 = vmul.f32 %v634, 0.70710677
    %v651 = vmul.f32 %v639, 0.70710677
    %v652 = vmul.f32 %v642, 0.70710677
    %v653 = verf.f32.pop %v649
    %v654 = verf.f32.pop %v650
    %v655 = verf.f32.pop %v651
    %v656 = verf.f32.pop %v652
    %v657 = vadd.f32 %v653, 1.0
    %v658 = vadd.f32 %v654, 1.0
    %v659 = vadd.f32 %v655, 1.0
    %v660 = vadd.f32 %v656, 1.0
    %v661 = vmul.f32 %v645, %v657
    %v662 = vmul.f32 %v646, %v658
    %v663 = vmul.f32 %v647, %v659
    %v664 = vmul.f32 %v648, %v660
    %v665 = vpack.c.bf16 %v662, %v661
    %v666 = vpack.c.bf16 %v664, %v663
    %v667 = vld [vmem:[%s6] sm:$0xf]
    %v668 = vld [vmem:[%s6 + $0x4] sm:$0xf]
    %v669 = vld [vmem:[%s6 + $0x8] sm:$0xf]
    %v670 = vld [vmem:[%s6 + $0xc] sm:$0xf]
    %v671 = vld [vmem:[%s6 + $0x10] sm:$0xf]
    %v672 = vld [vmem:[%s6 + $0x14] sm:$0xf]
    %v673 = vld [vmem:[%s6 + $0x18] sm:$0xf]
    %v674 = vld [vmem:[%s6 + $0x1c] sm:$0xf]
    %v675 = vld [vmem:[%s6 + $0x20] sm:$0xf]
    %v676 = vld [vmem:[%s6 + $0x24] sm:$0xf]
    %v677 = vld [vmem:[%s6 + $0x28] sm:$0xf]
    %v678 = vld [vmem:[%s6 + $0x2c] sm:$0xf]
    %v679 = vld [vmem:[%s6 + $0x30] sm:$0xf]
    %v680 = vld [vmem:[%s6 + $0x34] sm:$0xf]
    %v681 = vld [vmem:[%s6 + $0x38] sm:$0xf]
    %v682 = vld [vmem:[%s6 + $0x3c] sm:$0xf]
    %v683 = vld [vmem:[%s7] sm:$0x1]
    %v685 = vlaneseq
    %v686 = vshrl.u32 %v685, 7
    %v687 = vsub.s32 0, %v686
    %v688 = vrot.slane %v683, %v687
    %v706 = vunpack.c.l.b16 %v667
    %v707 = vunpack.c.l.b16 %v668
    %v708 = vunpack.c.l.b16 %v669
    %v709 = vunpack.c.l.b16 %v670
    %v710 = vunpack.c.l.b16 %v671
    %v711 = vunpack.c.l.b16 %v672
    %v712 = vunpack.c.l.b16 %v673
    %v713 = vunpack.c.l.b16 %v674
    %v714 = vunpack.c.l.b16 %v675
    %v715 = vunpack.c.l.b16 %v676
    %v716 = vunpack.c.l.b16 %v677
    %v717 = vunpack.c.l.b16 %v678
    %v718 = vunpack.c.l.b16 %v679
    %v719 = vunpack.c.l.b16 %v680
    %v720 = vunpack.c.l.b16 %v681
    %v721 = vunpack.c.l.b16 %v682
    %v722 = vpack.c.b16 %v707, %v706
    %v723 = vpack.c.b16 %v709, %v708
    %v724 = vpack.c.b16 %v711, %v710
    %v725 = vpack.c.b16 %v713, %v712
    %v726 = vpack.c.b16 %v715, %v714
    %v727 = vpack.c.b16 %v717, %v716
    %v728 = vpack.c.b16 %v719, %v718
    %v729 = vpack.c.b16 %v721, %v720
    %738 = vmatprep.subr.bf16.mxu0 0
    %739 = vmatpush1.bf16.msra.mxu0 %v722
    %740 = vmatprep.subr.bf16.mxu0 0
    %741 = vmatpush1.bf16.msra.mxu0 %v723
    %742 = vmatprep.subr.bf16.mxu0 0
    %743 = vmatpush1.bf16.msra.mxu0 %v724
    %744 = vmatprep.subr.bf16.mxu0 0
    %745 = vmatpush1.bf16.msra.mxu0 %v725
    %746 = vmatprep.subr.bf16.mxu0 0
    %747 = vmatpush1.bf16.msra.mxu0 %v726
    %748 = vmatprep.subr.bf16.mxu0 0
    %749 = vmatpush1.bf16.msra.mxu0 %v727
    %750 = vmatprep.subr.bf16.mxu0 0
    %751 = vmatpush1.bf16.msra.mxu0 %v728
    %752 = vmatprep.subr.bf16.mxu0 0
    %753 = vmatpush1.bf16.msra.mxu0 %v729
    %754 = vmatprep.subr.bf16.mxu0 0
    %755 = vmatpush1.bf16.msra.mxu0 0
    %756 = vmatprep.subr.bf16.mxu0 0
    %757 = vmatpush1.bf16.msra.mxu0 0
    %758 = vmatprep.subr.bf16.mxu0 0
    %759 = vmatpush1.bf16.msra.mxu0 0
    %760 = vmatprep.subr.bf16.mxu0 0
    %761 = vmatpush1.bf16.msra.mxu0 0
    %762 = vmatprep.subr.bf16.mxu0 0
    %763 = vmatpush1.bf16.msra.mxu0 0
    %764 = vmatprep.subr.bf16.mxu0 0
    %765 = vmatpush1.bf16.msra.mxu0 0
    %766 = vmatprep.subr.bf16.mxu0 0
    %767 = vmatpush1.bf16.msra.mxu0 0
    %768 = vmatprep.subr.bf16.mxu0 0
    %769 = vmatpush1.bf16.msra.mxu0 0
    %770 = vmatprep.mubr.bf16.mxu0 0
    %771 = vmatmul.mubr.bf16.gmra.mrb[0].mxu0 %v665
    %v772 = vpop.f32.mrb[0].mxu0
    %v773 = vadd.f32 %v688, %v772
    %v774 = vpop.f32.mrb[0].mxu0
    %v775 = vpop.f32.mrb[0].mxu0
    %v776 = vadd.f32 %v688, %v775
    %v777 = vpop.f32.mrb[0].mxu0
    %778 = vmatprep.mubr.bf16.mxu0 0
    %779 = vmatmul.mubr.bf16.gmra.mrb[0].mxu0 %v666
    %v780 = vpop.f32.mrb[0].mxu0
    %v781 = vadd.f32 %v688, %v780
    %v782 = vpop.f32.mrb[0].mxu0
    %v783 = vpop.f32.mrb[0].mxu0
    %v784 = vadd.f32 %v688, %v783
    %v785 = vpop.f32.mrb[0].mxu0
    %786 = vdwg.mxu0
    %787 = vst.msk [vmem:[#allocation5] sm:$0xff] %vm56, %v773
    %788 = vst.msk [vmem:[#allocation5 + $0x8] sm:$0xff] %vm56, %v776
    %789 = vst.msk [vmem:[#allocation5 + $0x10] sm:$0xff] %vm56, %v781
    %790 = vst.msk [vmem:[#allocation5 + $0x18] sm:$0xff] %vm56, %v784
    // Predicated region
    $region38: #{tpu_custom_call.1} parent=1 // pred_check
      _
    $region39: #{tpu_custom_call.1} parent=1 // pred_check_branch
      %792 = sbr.rel (0) target = $region41
    $region40: #{tpu_custom_call.1} parent=1 // pred_region
      %s794 = ssub.s32 512, 512
      %795 = vsyncadd [#allocation4], %s794
      %s796 = sshll.u32 [#allocation5], 4
      %s797 = int_to_ptr.vmem [resolvable:$true] %s796
      %802 = dma.vmem_to_hbm [thread:$0]  %s797, 512, %s8, [#allocation4], 128, 128, 8
    $region41: #{tpu_custom_call.1} parent=1 // pred_fallthru
      _
    // Predicated region
    $region42: #{tpu_custom_call.1} parent=1 // pred_check
      _
    $region43: #{tpu_custom_call.1} parent=1 // pred_check_branch
      %804 = sbr.rel (0) target = $region45
    $region44: #{tpu_custom_call.1} parent=1 // pred_region
      %805 = dma.done [#allocation4], 512
    $region45: #{tpu_custom_call.1} parent=1 // pred_fallthru
      _
    %806 = vsyncpa [#allocation3], 1
    %807 = vsyncpa [#allocation4], 1

</llo_original>
